<compile_context>
chip_gen: v7x
topology: tpu7x:2x2x1
jax: 0.10.0
libtpu: 0.0.40
codegen_flags: <defaults>
</compile_context>

<pallas_src>
import functools
import math

import jax
import jax.numpy as jnp
import numpy as np
from jax.experimental import pallas as pl
from jax.experimental.pallas import tpu as pltpu


def _round_up(x, m):
    return -(-x // m) * m


def _mhca_kernel(in_ref, out_ref, *, n, lq, lk, s, h,
                 q_off, kt_off, wqk_off, wvo_off, bc_off, mask_off,
                 has_mask, out_cols):
    """Whole batched problem in one invocation; one packed input, one packed output.

    in_ref  (rows, in_cols) f32 slab:
      [0:lq, q_off  + b*s  : +s ]   query[b]           (lq, s)
      [0:s,  kt_off + b*lk : +lk]   key[b]^T            (s, lk)
      [0:s,  wqk_off       : +s ]   w_qk                (s, s)
      [0:h,  wvo_off       : +s ]   w_vo^T              (h, s)
      [0:1,  bc_off        : +h ]   context bias        (1, h)
      [0:lq, mask_off      : +lk]   mask (optional)     (lq, lk), 1=keep 0=mask
    out_ref (lq, out_cols) f32 slab:
      lanes [b*lk : (b+1)*lk]             attn[b]       (lq, lk)
      lanes [n*lk + b*h : n*lk + (b+1)*h] out[b]        (lq, h)
    """
    w_qk = in_ref[0:s, wqk_off:wqk_off + s]            # (s, s)
    w_voT = in_ref[0:h, wvo_off:wvo_off + s]           # (h, s)
    bc = in_ref[0:1, bc_off:bc_off + h]                # (1, h)
    mask_v = in_ref[0:lq, mask_off:mask_off + lk] if has_mask else None

    attn_parts = []
    out_parts = []
    for b in range(n):                                  # static unroll (tiny N)
        q_b = in_ref[0:lq, q_off + b * s:q_off + (b + 1) * s]          # (lq, s)
        kT_b = in_ref[0:s, kt_off + b * lk:kt_off + (b + 1) * lk]      # (s, lk)

        # qp = q @ w_qk      -- K = s, unrolled broadcast-mul-add on the VPU (no MXU)
        qp = q_b[:, 0:1] * w_qk[0:1, :]
        for d in range(1, s):
            qp = qp + q_b[:, d:d + 1] * w_qk[d:d + 1, :]

        # scores = qp @ key^T   (1/sqrt(d_k) already folded into w_qk)
        sc = qp[:, 0:1] * kT_b[0:1, :]
        for d in range(1, s):
            sc = sc + qp[:, d:d + 1] * kT_b[d:d + 1, :]
        if has_mask:
            # PyTorch masks with -inf before the positive scale; folding the scale into
            # w_qk commutes because -inf is a fixed point of positive scaling.
            sc = jnp.where(mask_v != 0.0, sc, -jnp.inf)

        # softmax over the lane (Lk) axis; exact normalization (attn is materialized to HBM).
        m = jnp.max(sc, axis=-1, keepdims=True)
        e = jnp.exp(sc - m)
        l = jnp.sum(e, axis=-1, keepdims=True)
        attn_b = e / l                                                  # (lq, lk)
        # TODO(synk): nn.Dropout(p=0.2) on the attention scores is stochastic; eval-mode identity.

        # voT = w_vo^T @ key^T  -- V projection fused with the context transform
        voT = w_voT[:, 0:1] * kT_b[0:1, :]
        for d in range(1, s):
            voT = voT + w_voT[:, d:d + 1] * kT_b[d:d + 1, :]            # (h, lk)

        # out[:, j] = sum_k attn[:, k] * voT[j, k]   (lane reduction on the XLU)
        cols = [jnp.sum(attn_b * voT[j:j + 1, :], axis=-1, keepdims=True)
                for j in range(h)]
        out_b = jnp.concatenate(cols, axis=-1) + bc                     # (lq, h)

        attn_parts.append(attn_b)
        out_parts.append(out_b)

    pieces = attn_parts + out_parts
    used = n * lk + n * h
    if out_cols > used:
        pieces.append(jnp.zeros((lq, out_cols - used), jnp.float32))
    # single unmasked lane-dense store of the whole result slab
    out_ref[...] = jnp.concatenate(pieces, axis=-1)


def multi_head_cross_attention(key, query, params, mask=None, *,
                               num_heads, hidden_dim, state_dim):
    N, Lk, _ = key.shape
    _, Lq, _ = query.shape
    S, H = state_dim, hidden_dim

    d_k = state_dim // 2
    d_kv_total = hidden_dim ** 2
    d_v = d_kv_total - d_k
    # shape-consistency constraints implied by the PyTorch forward
    assert d_k == hidden_dim, "query/key contraction requires hidden_dim == state_dim // 2"
    assert d_k < d_kv_total <= 2 * d_k, "torch.split must yield exactly 2 chunks"
    assert d_v == hidden_dim, "context_transform in_features requires d_v == hidden_dim"

    Wk = params["W_key"].astype(jnp.float32)       # (hidden_dim**2, state_dim)
    Wq = params["W_query"].astype(jnp.float32)     # (hidden_dim, state_dim)
    Wc = params["W_ctx"].astype(jnp.float32)       # (hidden_dim, num_heads*hidden_dim)
    bc = params["b_ctx"].astype(jnp.float32)       # (hidden_dim,)

    # host-side weight folds (exact; done once)
    w_qk = (Wq.T @ Wk[:d_k, :]) * (1.0 / math.sqrt(d_k))               # (S, S)
    wc_sum = Wc.T.reshape(num_heads, d_v, hidden_dim).sum(axis=0)      # (d_v, H)
    w_voT = (Wk[d_k:, :].T @ wc_sum).T                                 # (H, S)

    has_mask = mask is not None

    # ---- input slab layout: single (8,128) f32 VMEM operand, single DMA ----
    q_off = 0
    kt_off = q_off + N * S
    wqk_off = kt_off + N * Lk
    wvo_off = wqk_off + S
    bc_off = wvo_off + S
    mask_off = bc_off + H
    used_in = mask_off + (Lk if has_mask else 0)
    in_rows = _round_up(max(Lq, S, H, 8), 8)
    in_cols = _round_up(max(used_in, 128), 128)

    qf = query.astype(jnp.float32)
    kf = key.astype(jnp.float32)
    slab = jnp.zeros((in_rows, in_cols), jnp.float32)
    for b in range(N):
        slab = slab.at[0:Lq, q_off + b * S:q_off + (b + 1) * S].set(qf[b])
        slab = slab.at[0:S, kt_off + b * Lk:kt_off + (b + 1) * Lk].set(kf[b].T)
    slab = slab.at[0:S, wqk_off:wqk_off + S].set(w_qk)
    slab = slab.at[0:H, wvo_off:wvo_off + S].set(w_voT)
    slab = slab.at[0:1, bc_off:bc_off + H].set(bc.reshape(1, H))
    if has_mask:
        slab = slab.at[0:Lq, mask_off:mask_off + Lk].set(mask.astype(jnp.float32))

    # ---- output slab: single lane-dense (Lq,128) f32 VMEM operand, single DMA ----
    out_used = N * Lk + N * H
    out_cols = _round_up(max(out_used, 128), 128)

    flops = 2 * N * (Lq * S * S + Lq * S * Lk + H * S * Lk + Lq * Lk * H)
    cost = pl.CostEstimate(flops=flops, transcendentals=N * Lq * Lk,
                           bytes_accessed=(in_rows * in_cols + Lq * out_cols) * 4)

    kernel = functools.partial(
        _mhca_kernel, n=N, lq=Lq, lk=Lk, s=S, h=H,
        q_off=q_off, kt_off=kt_off, wqk_off=wqk_off, wvo_off=wvo_off,
        bc_off=bc_off, mask_off=mask_off, has_mask=has_mask, out_cols=out_cols)

    vmem = pl.BlockSpec(memory_space=pltpu.MemorySpace.VMEM)
    out_slab = pl.pallas_call(
        kernel,
        out_shape=jax.ShapeDtypeStruct((Lq, out_cols), jnp.float32),
        in_specs=[vmem],
        out_specs=vmem,
        cost_estimate=cost,
    )(slab)

    # host-side unpack (layout plumbing only)
    attn = out_slab[:, :N * Lk].reshape(Lq, N, Lk).transpose(1, 0, 2)              # (N, Lq, Lk)
    out = out_slab[:, N * Lk:N * Lk + N * H].reshape(Lq, N, H).transpose(1, 0, 2)  # (N, Lq, H)

    # The module stores torch.stack([head.attention_scores ...], dim=1); heads are identical,
    # so return a size-1 head axis and let callers broadcast lazily to (N, num_heads, Lq, Lk).
    return out, attn[:, None]


def init_params(rng, hidden_dim, state_dim, num_heads):
    """Deterministic init mimicking nn.Linear's default U(-1/sqrt(fan_in), 1/sqrt(fan_in))."""
    k1, k2, k3, k4 = jax.random.split(rng, 4)

    def uni(k, shape, fan_in):
        b = 1.0 / math.sqrt(fan_in)
        return jax.random.uniform(k, shape, jnp.float32, -b, b)

    return {
        "W_key": uni(k1, (hidden_dim ** 2, state_dim), state_dim),
        "W_query": uni(k2, (hidden_dim, state_dim), state_dim),
        "W_ctx": uni(k3, (hidden_dim, num_heads * hidden_dim), num_heads * hidden_dim),
        "b_ctx": uni(k4, (hidden_dim,), num_heads * hidden_dim),
    }


def reference(key, query, params, mask, num_heads, hidden_dim, state_dim):
    """Pure-JAX reimplementation of the PyTorch forward (eval mode), unfolded weights."""
    d_k = state_dim // 2
    kv = key @ params["W_key"].T
    k, v = kv[..., :d_k], kv[..., d_k:]
    q = query @ params["W_query"].T
    scores = jnp.einsum("nqd,nkd->nqk", q, k)
    if mask is not None:
        scores = jnp.where(mask[None].astype(bool), scores, -jnp.inf)
    scores = scores / math.sqrt(d_k)
    attn = jax.nn.softmax(scores, axis=-1)
    ctx = jnp.einsum("nqk,nkd->nqd", attn, v)
    ctx_cat = jnp.concatenate([ctx] * num_heads, axis=-1)
    out = ctx_cat @ params["W_ctx"].T + params["b_ctx"]
    return out, attn


if __name__ == "__main__":
    # Only shape-consistent configuration of the module (see header note).
    hidden_dim, state_dim, num_heads = 2, 4, 4
    N, Lq, Lk = 2, 8, 8

    rng = jax.random.PRNGKey(0)
    kp, kk, kq, km = jax.random.split(rng, 4)
    params = init_params(kp, hidden_dim, state_dim, num_heads)
    key = jax.random.normal(kk, (N, Lk, state_dim), jnp.float32)
    query = jax.random.normal(kq, (N, Lq, state_dim), jnp.float32)
    # binary mask with at least one visible key per query row (avoids the all--inf NaN row)
    mask = (jax.random.uniform(km, (Lq, Lk)) > 0.35).astype(jnp.float32)
    mask = mask.at[:, 0].set(1.0)

    fn = jax.jit(functools.partial(
        multi_head_cross_attention,
        num_heads=num_heads, hidden_dim=hidden_dim, state_dim=state_dim))

    # ---- mask=None path ----
    out, attn_scores = fn(key, query, params)
    out, attn_scores = jax.block_until_ready((out, attn_scores))
    ref_out, ref_attn = reference(key, query, params, None,
                                  num_heads, hidden_dim, state_dim)
    np.testing.assert_allclose(np.asarray(out), np.asarray(ref_out), rtol=1e-4, atol=1e-5)
    np.testing.assert_allclose(np.asarray(attn_scores[:, 0]), np.asarray(ref_attn),
                               rtol=1e-4, atol=1e-5)
    assert attn_scores.shape == (N, 1, Lq, Lk)

    # ---- masked path ----
    out_m, attn_m = fn(key, query, params, mask)
    out_m, attn_m = jax.block_until_ready((out_m, attn_m))
    ref_out_m, ref_attn_m = reference(key, query, params, mask,
                                      num_heads, hidden_dim, state_dim)
    np.testing.assert_allclose(np.asarray(out_m), np.asarray(ref_out_m), rtol=1e-4, atol=1e-5)
    np.testing.assert_allclose(np.asarray(attn_m[:, 0]), np.asarray(ref_attn_m),
                               rtol=1e-4, atol=1e-5)

    # lazy broadcast to the module's stored attention shape, if a caller needs it
    assert jnp.broadcast_to(attn_scores, (N, num_heads, Lq, Lk)).shape == \
        (N, num_heads, Lq, Lk)

    print("KERNEL_OK")
</pallas_src>

<mosaic_0001>
module attributes {stable_mosaic.version = 11 : i64} {
  func.func @_mhca_kernel(%arg0: memref<8x128xf32, #tpu.memory_space<vmem>>, %arg1: memref<8x128xf32, #tpu.memory_space<vmem>>) attributes {dimension_semantics = [], scalar_prefetch = 0 : i64, scratch_operands = 0 : i64, tpu.core_type = #tpu.core_type<tc>} {
    %c0 = arith.constant 0 : index
    %c24 = arith.constant 24 : index
    %0 = vector.load %arg0[%c0, %c24] : memref<8x128xf32, #tpu.memory_space<vmem>>, vector<4x4xf32>
    %c0_0 = arith.constant 0 : index
    %c28 = arith.constant 28 : index
    %1 = vector.load %arg0[%c0_0, %c28] : memref<8x128xf32, #tpu.memory_space<vmem>>, vector<2x4xf32>
    %c0_1 = arith.constant 0 : index
    %c32 = arith.constant 32 : index
    %2 = vector.load %arg0[%c0_1, %c32] : memref<8x128xf32, #tpu.memory_space<vmem>>, vector<1x2xf32>
    %c0_2 = arith.constant 0 : index
    %c0_3 = arith.constant 0 : index
    %3 = vector.load %arg0[%c0_2, %c0_3] : memref<8x128xf32, #tpu.memory_space<vmem>>, vector<8x4xf32>
    %c0_4 = arith.constant 0 : index
    %c8 = arith.constant 8 : index
    %4 = vector.load %arg0[%c0_4, %c8] : memref<8x128xf32, #tpu.memory_space<vmem>>, vector<4x8xf32>
    %5 = vector.extract_strided_slice %3 {offsets = [0, 0], sizes = [8, 1], strides = [1, 1]} : vector<8x4xf32> to vector<8x1xf32>
    %6 = vector.extract_strided_slice %0 {offsets = [0, 0], sizes = [1, 4], strides = [1, 1]} : vector<4x4xf32> to vector<1x4xf32>
    %7 = vector.broadcast %5 : vector<8x1xf32> to vector<8x4xf32>
    %8 = vector.broadcast %6 : vector<1x4xf32> to vector<8x4xf32>
    %9 = arith.mulf %7, %8 : vector<8x4xf32>
    %10 = vector.extract_strided_slice %3 {offsets = [0, 1], sizes = [8, 1], strides = [1, 1]} : vector<8x4xf32> to vector<8x1xf32>
    %11 = vector.extract_strided_slice %0 {offsets = [1, 0], sizes = [1, 4], strides = [1, 1]} : vector<4x4xf32> to vector<1x4xf32>
    %12 = vector.broadcast %10 : vector<8x1xf32> to vector<8x4xf32>
    %13 = vector.broadcast %11 : vector<1x4xf32> to vector<8x4xf32>
    %14 = arith.mulf %12, %13 : vector<8x4xf32>
    %15 = arith.addf %9, %14 : vector<8x4xf32>
    %16 = vector.extract_strided_slice %3 {offsets = [0, 2], sizes = [8, 1], strides = [1, 1]} : vector<8x4xf32> to vector<8x1xf32>
    %17 = vector.extract_strided_slice %0 {offsets = [2, 0], sizes = [1, 4], strides = [1, 1]} : vector<4x4xf32> to vector<1x4xf32>
    %18 = vector.broadcast %16 : vector<8x1xf32> to vector<8x4xf32>
    %19 = vector.broadcast %17 : vector<1x4xf32> to vector<8x4xf32>
    %20 = arith.mulf %18, %19 : vector<8x4xf32>
    %21 = arith.addf %15, %20 : vector<8x4xf32>
    %22 = vector.extract_strided_slice %3 {offsets = [0, 3], sizes = [8, 1], strides = [1, 1]} : vector<8x4xf32> to vector<8x1xf32>
    %23 = vector.extract_strided_slice %0 {offsets = [3, 0], sizes = [1, 4], strides = [1, 1]} : vector<4x4xf32> to vector<1x4xf32>
    %24 = vector.broadcast %22 : vector<8x1xf32> to vector<8x4xf32>
    %25 = vector.broadcast %23 : vector<1x4xf32> to vector<8x4xf32>
    %26 = arith.mulf %24, %25 : vector<8x4xf32>
    %27 = arith.addf %21, %26 : vector<8x4xf32>
    %28 = vector.extract_strided_slice %27 {offsets = [0, 0], sizes = [8, 1], strides = [1, 1]} : vector<8x4xf32> to vector<8x1xf32>
    %29 = vector.extract_strided_slice %4 {offsets = [0, 0], sizes = [1, 8], strides = [1, 1]} : vector<4x8xf32> to vector<1x8xf32>
    %30 = vector.broadcast %28 : vector<8x1xf32> to vector<8x8xf32>
    %31 = vector.broadcast %29 : vector<1x8xf32> to vector<8x8xf32>
    %32 = arith.mulf %30, %31 : vector<8x8xf32>
    %33 = vector.extract_strided_slice %27 {offsets = [0, 1], sizes = [8, 1], strides = [1, 1]} : vector<8x4xf32> to vector<8x1xf32>
    %34 = vector.extract_strided_slice %4 {offsets = [1, 0], sizes = [1, 8], strides = [1, 1]} : vector<4x8xf32> to vector<1x8xf32>
    %35 = vector.broadcast %33 : vector<8x1xf32> to vector<8x8xf32>
    %36 = vector.broadcast %34 : vector<1x8xf32> to vector<8x8xf32>
    %37 = arith.mulf %35, %36 : vector<8x8xf32>
    %38 = arith.addf %32, %37 : vector<8x8xf32>
    %39 = vector.extract_strided_slice %27 {offsets = [0, 2], sizes = [8, 1], strides = [1, 1]} : vector<8x4xf32> to vector<8x1xf32>
    %40 = vector.extract_strided_slice %4 {offsets = [2, 0], sizes = [1, 8], strides = [1, 1]} : vector<4x8xf32> to vector<1x8xf32>
    %41 = vector.broadcast %39 : vector<8x1xf32> to vector<8x8xf32>
    %42 = vector.broadcast %40 : vector<1x8xf32> to vector<8x8xf32>
    %43 = arith.mulf %41, %42 : vector<8x8xf32>
    %44 = arith.addf %38, %43 : vector<8x8xf32>
    %45 = vector.extract_strided_slice %27 {offsets = [0, 3], sizes = [8, 1], strides = [1, 1]} : vector<8x4xf32> to vector<8x1xf32>
    %46 = vector.extract_strided_slice %4 {offsets = [3, 0], sizes = [1, 8], strides = [1, 1]} : vector<4x8xf32> to vector<1x8xf32>
    %47 = vector.broadcast %45 : vector<8x1xf32> to vector<8x8xf32>
    %48 = vector.broadcast %46 : vector<1x8xf32> to vector<8x8xf32>
    %49 = arith.mulf %47, %48 : vector<8x8xf32>
    %50 = arith.addf %44, %49 : vector<8x8xf32>
    %cst = arith.constant dense<0xFF800000> : vector<8xf32>
    %51 = vector.multi_reduction <maximumf>, %50, %cst [1] : vector<8x8xf32> to vector<8xf32>
    %52 = vector.shape_cast %51 : vector<8xf32> to vector<8x1xf32>
    %53 = vector.broadcast %52 : vector<8x1xf32> to vector<8x8xf32>
    %54 = arith.subf %50, %53 : vector<8x8xf32>
    %55 = math.exp %54 : vector<8x8xf32>
    %cst_5 = arith.constant dense<0.000000e+00> : vector<8xf32>
    %56 = vector.multi_reduction <add>, %55, %cst_5 [1] : vector<8x8xf32> to vector<8xf32>
    %57 = vector.shape_cast %56 : vector<8xf32> to vector<8x1xf32>
    %58 = vector.broadcast %57 : vector<8x1xf32> to vector<8x8xf32>
    %59 = arith.divf %55, %58 : vector<8x8xf32>
    %60 = vector.extract_strided_slice %1 {offsets = [0, 0], sizes = [2, 1], strides = [1, 1]} : vector<2x4xf32> to vector<2x1xf32>
    %61 = vector.extract_strided_slice %4 {offsets = [0, 0], sizes = [1, 8], strides = [1, 1]} : vector<4x8xf32> to vector<1x8xf32>
    %62 = vector.broadcast %60 : vector<2x1xf32> to vector<2x8xf32>
    %63 = vector.broadcast %61 : vector<1x8xf32> to vector<2x8xf32>
    %64 = arith.mulf %62, %63 : vector<2x8xf32>
    %65 = vector.extract_strided_slice %1 {offsets = [0, 1], sizes = [2, 1], strides = [1, 1]} : vector<2x4xf32> to vector<2x1xf32>
    %66 = vector.extract_strided_slice %4 {offsets = [1, 0], sizes = [1, 8], strides = [1, 1]} : vector<4x8xf32> to vector<1x8xf32>
    %67 = vector.broadcast %65 : vector<2x1xf32> to vector<2x8xf32>
    %68 = vector.broadcast %66 : vector<1x8xf32> to vector<2x8xf32>
    %69 = arith.mulf %67, %68 : vector<2x8xf32>
    %70 = arith.addf %64, %69 : vector<2x8xf32>
    %71 = vector.extract_strided_slice %1 {offsets = [0, 2], sizes = [2, 1], strides = [1, 1]} : vector<2x4xf32> to vector<2x1xf32>
    %72 = vector.extract_strided_slice %4 {offsets = [2, 0], sizes = [1, 8], strides = [1, 1]} : vector<4x8xf32> to vector<1x8xf32>
    %73 = vector.broadcast %71 : vector<2x1xf32> to vector<2x8xf32>
    %74 = vector.broadcast %72 : vector<1x8xf32> to vector<2x8xf32>
    %75 = arith.mulf %73, %74 : vector<2x8xf32>
    %76 = arith.addf %70, %75 : vector<2x8xf32>
    %77 = vector.extract_strided_slice %1 {offsets = [0, 3], sizes = [2, 1], strides = [1, 1]} : vector<2x4xf32> to vector<2x1xf32>
    %78 = vector.extract_strided_slice %4 {offsets = [3, 0], sizes = [1, 8], strides = [1, 1]} : vector<4x8xf32> to vector<1x8xf32>
    %79 = vector.broadcast %77 : vector<2x1xf32> to vector<2x8xf32>
    %80 = vector.broadcast %78 : vector<1x8xf32> to vector<2x8xf32>
    %81 = arith.mulf %79, %80 : vector<2x8xf32>
    %82 = arith.addf %76, %81 : vector<2x8xf32>
    %83 = vector.extract_strided_slice %82 {offsets = [0, 0], sizes = [1, 8], strides = [1, 1]} : vector<2x8xf32> to vector<1x8xf32>
    %84 = vector.broadcast %83 : vector<1x8xf32> to vector<8x8xf32>
    %85 = arith.mulf %59, %84 : vector<8x8xf32>
    %cst_6 = arith.constant dense<0.000000e+00> : vector<8xf32>
    %86 = vector.multi_reduction <add>, %85, %cst_6 [1] : vector<8x8xf32> to vector<8xf32>
    %87 = vector.shape_cast %86 : vector<8xf32> to vector<8x1xf32>
    %88 = vector.extract_strided_slice %82 {offsets = [1, 0], sizes = [1, 8], strides = [1, 1]} : vector<2x8xf32> to vector<1x8xf32>
    %89 = vector.broadcast %88 : vector<1x8xf32> to vector<8x8xf32>
    %90 = arith.mulf %59, %89 : vector<8x8xf32>
    %cst_7 = arith.constant dense<0.000000e+00> : vector<8xf32>
    %91 = vector.multi_reduction <add>, %90, %cst_7 [1] : vector<8x8xf32> to vector<8xf32>
    %92 = vector.shape_cast %91 : vector<8xf32> to vector<8x1xf32>
    %93 = tpu.concatenate %87, %92 in 1 : vector<8x1xf32>, vector<8x1xf32> -> vector<8x2xf32>
    %94 = vector.broadcast %2 : vector<1x2xf32> to vector<8x2xf32>
    %95 = arith.addf %93, %94 : vector<8x2xf32>
    %c0_8 = arith.constant 0 : index
    %c4 = arith.constant 4 : index
    %96 = vector.load %arg0[%c0_8, %c4] : memref<8x128xf32, #tpu.memory_space<vmem>>, vector<8x4xf32>
    %c0_9 = arith.constant 0 : index
    %c16 = arith.constant 16 : index
    %97 = vector.load %arg0[%c0_9, %c16] : memref<8x128xf32, #tpu.memory_space<vmem>>, vector<4x8xf32>
    %98 = vector.extract_strided_slice %96 {offsets = [0, 0], sizes = [8, 1], strides = [1, 1]} : vector<8x4xf32> to vector<8x1xf32>
    %99 = vector.extract_strided_slice %0 {offsets = [0, 0], sizes = [1, 4], strides = [1, 1]} : vector<4x4xf32> to vector<1x4xf32>
    %100 = vector.broadcast %98 : vector<8x1xf32> to vector<8x4xf32>
    %101 = vector.broadcast %99 : vector<1x4xf32> to vector<8x4xf32>
    %102 = arith.mulf %100, %101 : vector<8x4xf32>
    %103 = vector.extract_strided_slice %96 {offsets = [0, 1], sizes = [8, 1], strides = [1, 1]} : vector<8x4xf32> to vector<8x1xf32>
    %104 = vector.extract_strided_slice %0 {offsets = [1, 0], sizes = [1, 4], strides = [1, 1]} : vector<4x4xf32> to vector<1x4xf32>
    %105 = vector.broadcast %103 : vector<8x1xf32> to vector<8x4xf32>
    %106 = vector.broadcast %104 : vector<1x4xf32> to vector<8x4xf32>
    %107 = arith.mulf %105, %106 : vector<8x4xf32>
    %108 = arith.addf %102, %107 : vector<8x4xf32>
    %109 = vector.extract_strided_slice %96 {offsets = [0, 2], sizes = [8, 1], strides = [1, 1]} : vector<8x4xf32> to vector<8x1xf32>
    %110 = vector.extract_strided_slice %0 {offsets = [2, 0], sizes = [1, 4], strides = [1, 1]} : vector<4x4xf32> to vector<1x4xf32>
    %111 = vector.broadcast %109 : vector<8x1xf32> to vector<8x4xf32>
    %112 = vector.broadcast %110 : vector<1x4xf32> to vector<8x4xf32>
    %113 = arith.mulf %111, %112 : vector<8x4xf32>
    %114 = arith.addf %108, %113 : vector<8x4xf32>
    %115 = vector.extract_strided_slice %96 {offsets = [0, 3], sizes = [8, 1], strides = [1, 1]} : vector<8x4xf32> to vector<8x1xf32>
    %116 = vector.extract_strided_slice %0 {offsets = [3, 0], sizes = [1, 4], strides = [1, 1]} : vector<4x4xf32> to vector<1x4xf32>
    %117 = vector.broadcast %115 : vector<8x1xf32> to vector<8x4xf32>
    %118 = vector.broadcast %116 : vector<1x4xf32> to vector<8x4xf32>
    %119 = arith.mulf %117, %118 : vector<8x4xf32>
    %120 = arith.addf %114, %119 : vector<8x4xf32>
    %121 = vector.extract_strided_slice %120 {offsets = [0, 0], sizes = [8, 1], strides = [1, 1]} : vector<8x4xf32> to vector<8x1xf32>
    %122 = vector.extract_strided_slice %97 {offsets = [0, 0], sizes = [1, 8], strides = [1, 1]} : vector<4x8xf32> to vector<1x8xf32>
    %123 = vector.broadcast %121 : vector<8x1xf32> to vector<8x8xf32>
    %124 = vector.broadcast %122 : vector<1x8xf32> to vector<8x8xf32>
    %125 = arith.mulf %123, %124 : vector<8x8xf32>
    %126 = vector.extract_strided_slice %120 {offsets = [0, 1], sizes = [8, 1], strides = [1, 1]} : vector<8x4xf32> to vector<8x1xf32>
    %127 = vector.extract_strided_slice %97 {offsets = [1, 0], sizes = [1, 8], strides = [1, 1]} : vector<4x8xf32> to vector<1x8xf32>
    %128 = vector.broadcast %126 : vector<8x1xf32> to vector<8x8xf32>
    %129 = vector.broadcast %127 : vector<1x8xf32> to vector<8x8xf32>
    %130 = arith.mulf %128, %129 : vector<8x8xf32>
    %131 = arith.addf %125, %130 : vector<8x8xf32>
    %132 = vector.extract_strided_slice %120 {offsets = [0, 2], sizes = [8, 1], strides = [1, 1]} : vector<8x4xf32> to vector<8x1xf32>
    %133 = vector.extract_strided_slice %97 {offsets = [2, 0], sizes = [1, 8], strides = [1, 1]} : vector<4x8xf32> to vector<1x8xf32>
    %134 = vector.broadcast %132 : vector<8x1xf32> to vector<8x8xf32>
    %135 = vector.broadcast %133 : vector<1x8xf32> to vector<8x8xf32>
    %136 = arith.mulf %134, %135 : vector<8x8xf32>
    %137 = arith.addf %131, %136 : vector<8x8xf32>
    %138 = vector.extract_strided_slice %120 {offsets = [0, 3], sizes = [8, 1], strides = [1, 1]} : vector<8x4xf32> to vector<8x1xf32>
    %139 = vector.extract_strided_slice %97 {offsets = [3, 0], sizes = [1, 8], strides = [1, 1]} : vector<4x8xf32> to vector<1x8xf32>
    %140 = vector.broadcast %138 : vector<8x1xf32> to vector<8x8xf32>
    %141 = vector.broadcast %139 : vector<1x8xf32> to vector<8x8xf32>
    %142 = arith.mulf %140, %141 : vector<8x8xf32>
    %143 = arith.addf %137, %142 : vector<8x8xf32>
    %cst_10 = arith.constant dense<0xFF800000> : vector<8xf32>
    %144 = vector.multi_reduction <maximumf>, %143, %cst_10 [1] : vector<8x8xf32> to vector<8xf32>
    %145 = vector.shape_cast %144 : vector<8xf32> to vector<8x1xf32>
    %146 = vector.broadcast %145 : vector<8x1xf32> to vector<8x8xf32>
    %147 = arith.subf %143, %146 : vector<8x8xf32>
    %148 = math.exp %147 : vector<8x8xf32>
    %cst_11 = arith.constant dense<0.000000e+00> : vector<8xf32>
    %149 = vector.multi_reduction <add>, %148, %cst_11 [1] : vector<8x8xf32> to vector<8xf32>
    %150 = vector.shape_cast %149 : vector<8xf32> to vector<8x1xf32>
    %151 = vector.broadcast %150 : vector<8x1xf32> to vector<8x8xf32>
    %152 = arith.divf %148, %151 : vector<8x8xf32>
    %153 = vector.extract_strided_slice %1 {offsets = [0, 0], sizes = [2, 1], strides = [1, 1]} : vector<2x4xf32> to vector<2x1xf32>
    %154 = vector.extract_strided_slice %97 {offsets = [0, 0], sizes = [1, 8], strides = [1, 1]} : vector<4x8xf32> to vector<1x8xf32>
    %155 = vector.broadcast %153 : vector<2x1xf32> to vector<2x8xf32>
    %156 = vector.broadcast %154 : vector<1x8xf32> to vector<2x8xf32>
    %157 = arith.mulf %155, %156 : vector<2x8xf32>
    %158 = vector.extract_strided_slice %1 {offsets = [0, 1], sizes = [2, 1], strides = [1, 1]} : vector<2x4xf32> to vector<2x1xf32>
    %159 = vector.extract_strided_slice %97 {offsets = [1, 0], sizes = [1, 8], strides = [1, 1]} : vector<4x8xf32> to vector<1x8xf32>
    %160 = vector.broadcast %158 : vector<2x1xf32> to vector<2x8xf32>
    %161 = vector.broadcast %159 : vector<1x8xf32> to vector<2x8xf32>
    %162 = arith.mulf %160, %161 : vector<2x8xf32>
    %163 = arith.addf %157, %162 : vector<2x8xf32>
    %164 = vector.extract_strided_slice %1 {offsets = [0, 2], sizes = [2, 1], strides = [1, 1]} : vector<2x4xf32> to vector<2x1xf32>
    %165 = vector.extract_strided_slice %97 {offsets = [2, 0], sizes = [1, 8], strides = [1, 1]} : vector<4x8xf32> to vector<1x8xf32>
    %166 = vector.broadcast %164 : vector<2x1xf32> to vector<2x8xf32>
    %167 = vector.broadcast %165 : vector<1x8xf32> to vector<2x8xf32>
    %168 = arith.mulf %166, %167 : vector<2x8xf32>
    %169 = arith.addf %163, %168 : vector<2x8xf32>
    %170 = vector.extract_strided_slice %1 {offsets = [0, 3], sizes = [2, 1], strides = [1, 1]} : vector<2x4xf32> to vector<2x1xf32>
    %171 = vector.extract_strided_slice %97 {offsets = [3, 0], sizes = [1, 8], strides = [1, 1]} : vector<4x8xf32> to vector<1x8xf32>
    %172 = vector.broadcast %170 : vector<2x1xf32> to vector<2x8xf32>
    %173 = vector.broadcast %171 : vector<1x8xf32> to vector<2x8xf32>
    %174 = arith.mulf %172, %173 : vector<2x8xf32>
    %175 = arith.addf %169, %174 : vector<2x8xf32>
    %176 = vector.extract_strided_slice %175 {offsets = [0, 0], sizes = [1, 8], strides = [1, 1]} : vector<2x8xf32> to vector<1x8xf32>
    %177 = vector.broadcast %176 : vector<1x8xf32> to vector<8x8xf32>
    %178 = arith.mulf %152, %177 : vector<8x8xf32>
    %cst_12 = arith.constant dense<0.000000e+00> : vector<8xf32>
    %179 = vector.multi_reduction <add>, %178, %cst_12 [1] : vector<8x8xf32> to vector<8xf32>
    %180 = vector.shape_cast %179 : vector<8xf32> to vector<8x1xf32>
    %181 = vector.extract_strided_slice %175 {offsets = [1, 0], sizes = [1, 8], strides = [1, 1]} : vector<2x8xf32> to vector<1x8xf32>
    %182 = vector.broadcast %181 : vector<1x8xf32> to vector<8x8xf32>
    %183 = arith.mulf %152, %182 : vector<8x8xf32>
    %cst_13 = arith.constant dense<0.000000e+00> : vector<8xf32>
    %184 = vector.multi_reduction <add>, %183, %cst_13 [1] : vector<8x8xf32> to vector<8xf32>
    %185 = vector.shape_cast %184 : vector<8xf32> to vector<8x1xf32>
    %186 = tpu.concatenate %180, %185 in 1 : vector<8x1xf32>, vector<8x1xf32> -> vector<8x2xf32>
    %187 = vector.broadcast %2 : vector<1x2xf32> to vector<8x2xf32>
    %188 = arith.addf %186, %187 : vector<8x2xf32>
    %cst_14 = arith.constant 0.000000e+00 : f32
    %189 = vector.broadcast %cst_14 : f32 to vector<8x108xf32>
    %190 = tpu.concatenate %59, %152, %95, %188, %189 in 1 : vector<8x8xf32>, vector<8x8xf32>, vector<8x2xf32>, vector<8x2xf32>, vector<8x108xf32> -> vector<8x128xf32>
    %c0_15 = arith.constant 0 : index
    %c0_16 = arith.constant 0 : index
    %191 = vector.load %arg1[%c0_15, %c0_16] : memref<8x128xf32, #tpu.memory_space<vmem>>, vector<8x128xf32>
    tpu.vector_store %arg1[%c0_15, %c0_16], %190 {strides = array<i32>} : memref<8x128xf32, #tpu.memory_space<vmem>>, vector<8x128xf32>,
    return
  }
}

</mosaic_0001>

<llo_original>
// kernel: multi_head_cross_attention.1
$region0: #{multi_head_cross_attention.1}
  #allocation0 [shape = 'u32[]', space=smem, size = 0x4, offset = 0x4, fixed_abs, tag = 'smem constant byte address 0x4 - core index']
  #allocation1 [shape = 'u32[144,128]{1,0:T(1,128)}', space=vmem, size = 0x12000, scoped, tag = 'internal scratch']
  %s0 = inlined_call_operand.vmem [shape: f32[8,128], index: 0, kind: input, shape index: {}]
  %s1 = inlined_call_operand.vmem [shape: f32[8,128], index: 1, kind: output, shape index: {}]
  %s2 = sld [smem:[#allocation0]]
  $region14: #{multi_head_cross_attention.1} parent=0
    _
  %s4 = ssub.s32 1, %s2
  %s5 = scalar_select 0, %s4, %s2
  // Predicated region
  $region2: #{multi_head_cross_attention.1} parent=0 // pred_check
    _
  $region3: #{multi_head_cross_attention.1} parent=0 // pred_check_branch
    %7 = sbr.rel (0) target = $region5
  $region4: #{multi_head_cross_attention.1} parent=0 // pred_region
    _
  $region5: #{multi_head_cross_attention.1} parent=0 // pred_fallthru
    _
  %v8 = vld [vmem:[%s0] sm:$0xf]
  %v9 = vld [vmem:[%s0] sm:$0x3]
  %v10 = vld [vmem:[%s0] sm:$0x1]
  %v11 = vld [vmem:[%s0] sm:$0xff]
  %13 = vset.pattern.permute.xlu0 0
  %14 = vperm.xlu0 %13, %v11
  %v15 = vpop.permute.xlu0 %14
  %v17 = vlaneseq
  %v18 = vshrl.u32 %v17, 7
  %v19 = vsub.s32 0, %v18
  %v20 = vrot.slane %v8, %v19
  %v21 = vmul.f32 %v15, %v20
  %22 = vset.pattern.permute.xlu0 1
  %23 = vperm.xlu0 %22, %v11
  %v24 = vpop.permute.xlu0 %23
  %v26 = vlaneseq
  %v27 = vshrl.u32 %v26, 7
  %v28 = vsub.s32 1, %v27
  %v29 = vrot.slane %v8, %v28
  %v30 = vmul.f32 %v24, %v29
  %v31 = vadd.f32 %v21, %v30
  %32 = vset.pattern.permute.xlu0 2
  %33 = vperm.xlu0 %32, %v11
  %v34 = vpop.permute.xlu0 %33
  %v36 = vlaneseq
  %v37 = vshrl.u32 %v36, 7
  %v38 = vsub.s32 2, %v37
  %v39 = vrot.slane %v8, %v38
  %v40 = vmul.f32 %v34, %v39
  %v41 = vadd.f32 %v31, %v40
  %42 = vset.pattern.permute.xlu0 3
  %43 = vperm.xlu0 %42, %v11
  %v44 = vpop.permute.xlu0 %43
  %v46 = vlaneseq
  %v47 = vshrl.u32 %v46, 7
  %v48 = vsub.s32 3, %v47
  %v49 = vrot.slane %v8, %v48
  %v50 = vmul.f32 %v44, %v49
  %v51 = vadd.f32 %v41, %v50
  %53 = vset.pattern.permute.xlu0 24
  %54 = vperm.xlu0 %53, %v51
  %v55 = vpop.permute.xlu0 %54
  %v57 = vmul.f32 %v55, %v20
  %58 = vset.pattern.permute.xlu0 25
  %59 = vperm.xlu0 %58, %v51
  %v60 = vpop.permute.xlu0 %59
  %v62 = vmul.f32 %v60, %v29
  %v63 = vadd.f32 %v57, %v62
  %64 = vset.pattern.permute.xlu0 26
  %65 = vperm.xlu0 %64, %v51
  %v66 = vpop.permute.xlu0 %65
  %v68 = vmul.f32 %v66, %v39
  %v69 = vadd.f32 %v63, %v68
  %70 = vset.pattern.permute.xlu0 27
  %71 = vperm.xlu0 %70, %v51
  %v72 = vpop.permute.xlu0 %71
  %v74 = vmul.f32 %v72, %v49
  %v75 = vadd.f32 %v69, %v74
  %vm76 = vcmask 130112
  %v77 = vsel %vm76, %v75, -inf
  %78 = vmax.xlane.f32.xlu0 %v77
  %v79 = vpop.xlane.xlu0 %78
  %v80 = vsub.f32 %v75, %v79
  %v81 = vmul.f32 %v80, 1.442695
  %v82 = vpow.pop %v81
  %84 = vrot.lane.b32.xlu0 %v82, 120
  %v85 = vpop.permute.xlu0 %84
  %vm87 = vcmask 64512
  %v88 = vsel %vm87, %v85, 0.0
  %89 = vadd.xlane.f32.xlu0 %v88
  %v90 = vpop.xlane.xlu0 %89
  %v91 = vrcp.pop %v90
  %v92 = vmul.f32 %v82, %v91
  %94 = vset.pattern.permute.xlu0 28
  %95 = vperm.xlu0 %94, %v9
  %v96 = vpop.permute.xlu0 %95
  %v98 = vmul.f32 %v96, %v20
  %99 = vset.pattern.permute.xlu0 29
  %100 = vperm.xlu0 %99, %v9
  %v101 = vpop.permute.xlu0 %100
  %v103 = vmul.f32 %v101, %v29
  %v104 = vadd.f32 %v98, %v103
  %105 = vset.pattern.permute.xlu0 30
  %106 = vperm.xlu0 %105, %v9
  %v107 = vpop.permute.xlu0 %106
  %v109 = vmul.f32 %v107, %v39
  %v110 = vadd.f32 %v104, %v109
  %111 = vset.pattern.permute.xlu0 31
  %112 = vperm.xlu0 %111, %v9
  %v113 = vpop.permute.xlu0 %112
  %v115 = vmul.f32 %v113, %v49
  %v116 = vadd.f32 %v110, %v115
  %v117 = vlaneseq
  %v118 = vshrl.u32 %v117, 7
  %v119 = vsub.s32 0, %v118
  %v120 = vrot.slane %v116, %v119
  %v121 = vmul.f32 %v92, %v120
  %123 = vrot.lane.b32.xlu0 %v121, 120
  %v124 = vpop.permute.xlu0 %123
  %v126 = vsel %vm87, %v124, 0.0
  %127 = vadd.xlane.f32.xlu0 %v126
  %v128 = vpop.xlane.xlu0 %127
  %v129 = vlaneseq
  %v130 = vshrl.u32 %v129, 7
  %v131 = vsub.s32 1, %v130
  %v132 = vrot.slane %v116, %v131
  %v133 = vmul.f32 %v92, %v132
  %135 = vrot.lane.b32.xlu0 %v133, 120
  %v136 = vpop.permute.xlu0 %135
  %v138 = vsel %vm87, %v136, 0.0
  %139 = vadd.xlane.f32.xlu0 %v138
  %v140 = vpop.xlane.xlu0 %139
  %vm141 = vcmask 7168
  %v142 = vsel %vm141, %v128, %v140
  %v143 = vlaneseq
  %v144 = vshrl.u32 %v143, 7
  %v145 = vsub.s32 0, %v144
  %v146 = vrot.slane %v10, %v145
  %148 = vrot.lane.b32.xlu0 %v146, 96
  %v149 = vpop.permute.xlu0 %148
  %v151 = vadd.f32 %v142, %v149
  %152 = vset.pattern.permute.xlu0 4
  %153 = vperm.xlu0 %152, %v11
  %v154 = vpop.permute.xlu0 %153
  %v156 = vmul.f32 %v154, %v20
  %157 = vset.pattern.permute.xlu0 5
  %158 = vperm.xlu0 %157, %v11
  %v159 = vpop.permute.xlu0 %158
  %v161 = vmul.f32 %v159, %v29
  %v162 = vadd.f32 %v156, %v161
  %163 = vset.pattern.permute.xlu0 6
  %164 = vperm.xlu0 %163, %v11
  %v165 = vpop.permute.xlu0 %164
  %v167 = vmul.f32 %v165, %v39
  %v168 = vadd.f32 %v162, %v167
  %169 = vset.pattern.permute.xlu0 7
  %170 = vperm.xlu0 %169, %v11
  %v171 = vpop.permute.xlu0 %170
  %v173 = vmul.f32 %v171, %v49
  %v174 = vadd.f32 %v168, %v173
  %176 = vset.pattern.permute.xlu0 24
  %177 = vperm.xlu0 %176, %v174
  %v178 = vpop.permute.xlu0 %177
  %v180 = vmul.f32 %v178, %v20
  %181 = vset.pattern.permute.xlu0 25
  %182 = vperm.xlu0 %181, %v174
  %v183 = vpop.permute.xlu0 %182
  %v185 = vmul.f32 %v183, %v29
  %v186 = vadd.f32 %v180, %v185
  %187 = vset.pattern.permute.xlu0 26
  %188 = vperm.xlu0 %187, %v174
  %v189 = vpop.permute.xlu0 %188
  %v191 = vmul.f32 %v189, %v39
  %v192 = vadd.f32 %v186, %v191
  %193 = vset.pattern.permute.xlu0 27
  %194 = vperm.xlu0 %193, %v174
  %v195 = vpop.permute.xlu0 %194
  %v197 = vmul.f32 %v195, %v49
  %v198 = vadd.f32 %v192, %v197
  %vm199 = vcmask 195712
  %v200 = vsel %vm199, %v198, -inf
  %201 = vmax.xlane.f32.xlu0 %v200
  %v202 = vpop.xlane.xlu0 %201
  %v203 = vsub.f32 %v198, %v202
  %v204 = vmul.f32 %v203, 1.442695
  %v205 = vpow.pop %v204
  %207 = vrot.lane.b32.xlu0 %v205, 112
  %v208 = vpop.permute.xlu0 %207
  %v210 = vsel %vm87, %v208, 0.0
  %211 = vadd.xlane.f32.xlu0 %v210
  %v212 = vpop.xlane.xlu0 %211
  %v213 = vrcp.pop %v212
  %v214 = vmul.f32 %v205, %v213
  %v215 = vmul.f32 %v214, %v120
  %217 = vrot.lane.b32.xlu0 %v215, 112
  %v218 = vpop.permute.xlu0 %217
  %v220 = vsel %vm87, %v218, 0.0
  %221 = vadd.xlane.f32.xlu0 %v220
  %v222 = vpop.xlane.xlu0 %221
  %v223 = vmul.f32 %v214, %v132
  %225 = vrot.lane.b32.xlu0 %v223, 112
  %v226 = vpop.permute.xlu0 %225
  %v228 = vsel %vm87, %v226, 0.0
  %229 = vadd.xlane.f32.xlu0 %v228
  %v230 = vpop.xlane.xlu0 %229
  %v231 = vsel %vm141, %v222, %v230
  %v232 = vadd.f32 %v231, %v149
  %234 = vrot.lane.b32.xlu0 %v92, 120
  %v235 = vpop.permute.xlu0 %234
  %238 = vrot.lane.b32.xlu0 %v214, 120
  %v239 = vpop.permute.xlu0 %238
  %242 = vrot.lane.b32.xlu0 %v151, 16
  %v243 = vpop.permute.xlu0 %242
  %246 = vrot.lane.b32.xlu0 %v232, 18
  %v247 = vpop.permute.xlu0 %246
  %v249 = vsel %vm87, %v235, %v239
  %vm250 = vcmask 130048
  %v251 = vsel %vm250, %v249, %v243
  %vm252 = vcmask 146432
  %v253 = vsel %vm252, %v251, %v247
  %vm254 = vcmask 162816
  %v255 = vsel %vm254, %v253, 0.0
  %256 = vst [vmem:[%s1] sm:$0xff] %v255
  // Predicated region
  $region6: #{multi_head_cross_attention.1} parent=0 // pred_check
    _
  $region7: #{multi_head_cross_attention.1} parent=0 // pred_check_branch
    %258 = sbr.rel (0) target = $region9
  $region8: #{multi_head_cross_attention.1} parent=0 // pred_region
    _
  $region9: #{multi_head_cross_attention.1} parent=0 // pred_fallthru
    _
  // Predicated region
  $region10: #{multi_head_cross_attention.1} parent=0 // pred_check
    _
  $region11: #{multi_head_cross_attention.1} parent=0 // pred_check_branch
    %260 = sbr.rel (0) target = $region13
  $region12: #{multi_head_cross_attention.1} parent=0 // pred_region
    _
  $region13: #{multi_head_cross_attention.1} parent=0 // pred_fallthru
    _

</llo_original>
